<compile_context>
chip_gen: v5e
topology: v5e:2x2
jax: 0.10.0
libtpu: 0.0.40
codegen_flags: <defaults>
</compile_context>

<pallas_src>
import functools

import jax
import jax.numpy as jnp
from jax.experimental import pallas as pl
from jax.experimental.pallas import tpu as pltpu


def _round_up(n, m):
    return ((n + m - 1) // m) * m


def mlp_kernel(xT_ref, w1_ref, b1_ref, w2_ref, b2_ref, w3_ref, b3_ref, oT_ref):
    # Feature-major: activations are (features, batch_tile), batch on lanes.
    # Layer 1: (H, IN) @ (IN, tm) + (H, 1) -> ReLU   (f32 accumulate on MXU)
    h1 = jnp.dot(w1_ref[...], xT_ref[...], preferred_element_type=jnp.float32)
    h1 = jnp.maximum(h1 + b1_ref[...], 0.0)
    # Layer 2: (H, H) @ (H, tm) + (H, 1) -> ReLU
    h2 = jnp.dot(w2_ref[...], h1.astype(w2_ref.dtype),
                 preferred_element_type=jnp.float32)
    h2 = jnp.maximum(h2 + b2_ref[...], 0.0)
    # Layer 3: (OUT_P, H) @ (H, tm) + (OUT_P, 1); rows OUT..OUT_P-1 are zero
    # padding (zero weights + zero bias) and are sliced off in the wrapper.
    h3 = jnp.dot(w3_ref[...], h2.astype(w3_ref.dtype),
                 preferred_element_type=jnp.float32)
    oT_ref[...] = (h3 + b3_ref[...]).astype(oT_ref.dtype)


def prepare_params(w1, b1, w2, b2, w3, b3, *, mxu_dtype=jnp.bfloat16):
    """One-off parameter prep (hoisted out of the per-call hot path).

    Weights are transposed to (out_features, in_features) for feature-major
    compute and cast to the MXU operand dtype (bf16 is safe on v5e/v6e/v7x:
    only the MXU sees it; bias-add/ReLU/accumulation stay f32). The last layer
    is zero-padded to 8 output rows (sublane multiple); biases become
    (features, 1) columns that broadcast across batch lanes.
    """
    H = w1.shape[1]
    OUT = w3.shape[1]
    OUT_P = _round_up(OUT, 8)
    f32 = jnp.float32
    w1t = w1.astype(f32).T.astype(mxu_dtype)                      # (H, IN)
    w2t = w2.astype(f32).T.astype(mxu_dtype)                      # (H, H)
    w3t = (jnp.zeros((OUT_P, H), f32)
           .at[:OUT, :].set(w3.astype(f32).T).astype(mxu_dtype))  # (OUT_P, H)
    b1c = b1.astype(f32).reshape(H, 1)
    b2c = b2.astype(f32).reshape(H, 1)
    b3c = jnp.zeros((OUT_P, 1), f32).at[:OUT, :].set(
        b3.astype(f32).reshape(OUT, 1))
    return (w1t, b1c, w2t, b2c, w3t, b3c)


def _default_num_batch_tiles(batch):
    """2 grid steps on v7x (2 TensorCores/chip) so both TCs get work; 1 on
    single-TC v5e/v6e where extra grid steps are pure per-step overhead."""
    try:
        kind = jax.devices()[0].device_kind.lower()
    except Exception:
        kind = ""
    if ("v7" in kind or "7x" in kind) and batch > 128:
        return 2
    return 1


@functools.partial(jax.jit, static_argnames=("out_size", "num_batch_tiles"))
def mlp_forward(x, params, *, out_size, num_batch_tiles=1):
    """Forward pass of MLPNetwork via one pallas_call.

    `params` comes from prepare_params() (call once per model). Inside this
    jit the only per-call extras are a fused batch-pad/transpose of x and the
    fused final slice/transpose of the (tiny) output.
    """
    w1t, b1c, w2t, b2c, w3t, b3c = params
    B, IN = x.shape
    H = w1t.shape[0]
    OUT_P = w3t.shape[0]
    mxu_dtype = w1t.dtype

    # Batch tile: multiple of 128 lanes -> lane-dense, unmasked output stores.
    tm = _round_up(pl.cdiv(B, num_batch_tiles), 128)
    B_P = tm * num_batch_tiles

    # Feature-major input (IN, B_P); padded batch columns are zero and their
    # (garbage ReLU(b)-propagated) outputs are sliced off below.
    xT = jnp.zeros((IN, B_P), mxu_dtype).at[:, :B].set(x.T.astype(mxu_dtype))

    nbytes = lambda a: a.size * a.dtype.itemsize
    flops = 2 * B_P * (IN * H + H * H + H * OUT_P)
    bytes_accessed = (nbytes(xT) + nbytes(w1t) + nbytes(w2t) + nbytes(w3t)
                      + nbytes(b1c) + nbytes(b2c) + nbytes(b3c)
                      + OUT_P * B_P * 4)

    # Constant block index -> weights/biases DMA'd once, VMEM-resident across
    # the batch grid.
    resident = lambda shape: pl.BlockSpec(shape, lambda i: (0, 0))

    # VMEM per grid step: x tile (IN*tm*2B) + out tile (OUT_P*tm*4B) + ~22 KiB
    # of weights, double-buffered -> far under the 32 MiB scoped default for
    # any realistic tm. Only if tm were pushed past ~100K (esp. on v7x with
    # 64 MiB physical VMEM) would vmem_limit_bytes need raising.
    outT = pl.pallas_call(
        mlp_kernel,
        out_shape=jax.ShapeDtypeStruct((OUT_P, B_P), jnp.float32),
        grid=(num_batch_tiles,),
        in_specs=[
            pl.BlockSpec((IN, tm), lambda i: (0, i)),   # x^T tiled over batch
            resident(w1t.shape), resident(b1c.shape),
            resident(w2t.shape), resident(b2c.shape),
            resident(w3t.shape), resident(b3c.shape),
        ],
        out_specs=pl.BlockSpec((OUT_P, tm), lambda i: (0, i)),
        compiler_params=pltpu.CompilerParams(
            dimension_semantics=("parallel",)),
        cost_estimate=pl.CostEstimate(
            flops=flops, transcendentals=0, bytes_accessed=bytes_accessed),
    )(xT, w1t, b1c, w2t, b2c, w3t, b3c)

    # Drop padded output rows / padded batch columns; back to (B, OUT).
    return outT[:out_size, :B].T


def init_params(key, input_size=5, output_size=3, hidden_size=32):
    # Deterministic init mimicking torch.nn.Linear default:
    # U(-1/sqrt(fan_in), 1/sqrt(fan_in)) for both weight and bias.
    ks = jax.random.split(key, 6)

    def linear(kw, kb, fan_in, fan_out):
        bound = 1.0 / jnp.sqrt(fan_in)
        # stored as (in, out) so the reference computes x @ W + b
        w = jax.random.uniform(kw, (fan_in, fan_out), jnp.float32, -bound, bound)
        b = jax.random.uniform(kb, (1, fan_out), jnp.float32, -bound, bound)
        return w, b

    w1, b1 = linear(ks[0], ks[1], input_size, hidden_size)
    w2, b2 = linear(ks[2], ks[3], hidden_size, hidden_size)
    w3, b3 = linear(ks[4], ks[5], hidden_size, output_size)
    return w1, b1, w2, b2, w3, b3


def _ref_forward(x, w1, b1, w2, b2, w3, b3):
    h = jnp.maximum(x @ w1 + b1, 0.0)
    h = jnp.maximum(h @ w2 + b2, 0.0)
    return h @ w3 + b3


if __name__ == "__main__":
    key = jax.random.PRNGKey(0)
    k_x, k_p, k_big = jax.random.split(key, 3)

    B, IN, HID, OUT = 8, 5, 32, 3
    x = jax.random.normal(k_x, (B, IN), jnp.float32)
    w1, b1, w2, b2, w3, b3 = init_params(k_p, IN, OUT, HID)
    ref_small = _ref_forward(x, w1, b1, w2, b2, w3, b3)

    # f32 MXU operands: bit-tight check (single grid step, B=8 -> tm=128).
    params_f32 = prepare_params(w1, b1, w2, b2, w3, b3, mxu_dtype=jnp.float32)
    out_f32 = jax.block_until_ready(
        mlp_forward(x, params_f32, out_size=OUT, num_batch_tiles=1))
    assert out_f32.shape == (B, OUT)
    assert jnp.allclose(out_f32, ref_small, atol=1e-5, rtol=1e-5)

    # bf16 MXU operands (default on all generations): looser tolerance since
    # h1/h2 are truncated to bf16 between layers (f32 accumulation preserved).
    params_bf16 = prepare_params(w1, b1, w2, b2, w3, b3)
    out_bf16 = jax.block_until_ready(
        mlp_forward(x, params_bf16, out_size=OUT,
                    num_batch_tiles=_default_num_batch_tiles(B)))
    assert out_bf16.shape == (B, OUT)
    assert jnp.allclose(out_bf16, ref_small, atol=2e-2, rtol=2e-2)

    # Larger batch with a forced 2-step grid exercises batch tiling, the
    # remainder padding (B=300 -> tm=256, B_P=512) and weight residency
    # across grid steps (this is also the v7x megacore configuration).
    xb = jax.random.normal(k_big, (300, IN), jnp.float32)
    ref_big = _ref_forward(xb, w1, b1, w2, b2, w3, b3)
    out_big = jax.block_until_ready(
        mlp_forward(xb, params_f32, out_size=OUT, num_batch_tiles=2))
    assert out_big.shape == (300, OUT)
    assert jnp.allclose(out_big, ref_big, atol=1e-4, rtol=1e-4)

    out_big_bf16 = jax.block_until_ready(
        mlp_forward(xb, params_bf16, out_size=OUT,
                    num_batch_tiles=_default_num_batch_tiles(300)))
    assert jnp.allclose(out_big_bf16, ref_big, atol=2e-2, rtol=2e-2)

    print("KERNEL_OK")
</pallas_src>

<mosaic_0001>
module attributes {stable_mosaic.version = 11 : i64} {
  func.func @mlp_kernel(%arg0: i32, %arg1: memref<5x128xf32, #tpu.memory_space<vmem>>, %arg2: memref<32x5xf32, #tpu.memory_space<vmem>>, %arg3: memref<32x1xf32, #tpu.memory_space<vmem>>, %arg4: memref<32x32xf32, #tpu.memory_space<vmem>>, %arg5: memref<32x1xf32, #tpu.memory_space<vmem>>, %arg6: memref<8x32xf32, #tpu.memory_space<vmem>>, %arg7: memref<8x1xf32, #tpu.memory_space<vmem>>, %arg8: memref<8x128xf32, #tpu.memory_space<vmem>>) attributes {dimension_semantics = [#tpu.dimension_semantics<parallel>], iteration_bounds = array<i64: 1>, scalar_prefetch = 0 : i64, scratch_operands = 0 : i64, tpu.core_type = #tpu.core_type<tc>, window_params = [{transform_indices = @transform_0, window_bounds = array<i64: 5, 128>}, {pipeline_mode = #tpu.pipeline_mode<synchronous>, transform_indices = @transform_1, window_bounds = array<i64: 32, 5>}, {pipeline_mode = #tpu.pipeline_mode<synchronous>, transform_indices = @transform_2, window_bounds = array<i64: 32, 1>}, {pipeline_mode = #tpu.pipeline_mode<synchronous>, transform_indices = @transform_3, window_bounds = array<i64: 32, 32>}, {pipeline_mode = #tpu.pipeline_mode<synchronous>, transform_indices = @transform_4, window_bounds = array<i64: 32, 1>}, {pipeline_mode = #tpu.pipeline_mode<synchronous>, transform_indices = @transform_5, window_bounds = array<i64: 8, 32>}, {pipeline_mode = #tpu.pipeline_mode<synchronous>, transform_indices = @transform_6, window_bounds = array<i64: 8, 1>}, {transform_indices = @transform_7, window_bounds = array<i64: 8, 128>}]} {
    %c0 = arith.constant 0 : index
    %c0_0 = arith.constant 0 : index
    %0 = vector.load %arg2[%c0, %c0_0] : memref<32x5xf32, #tpu.memory_space<vmem>>, vector<32x5xf32>
    %c0_1 = arith.constant 0 : index
    %c0_2 = arith.constant 0 : index
    %1 = vector.load %arg1[%c0_1, %c0_2] : memref<5x128xf32, #tpu.memory_space<vmem>>, vector<5x128xf32>
    %cst = arith.constant dense<0.000000e+00> : vector<32x128xf32>
    %2 = tpu.matmul %0, %1, %cst {dimension_numbers = #tpu.dot_dimension_numbers<[1], [0], [0], [1], [0, 0, 1, 1], [], []>} : vector<32x5xf32>, vector<5x128xf32>, vector<32x128xf32> -> vector<32x128xf32>
    %c0_3 = arith.constant 0 : index
    %c0_4 = arith.constant 0 : index
    %3 = vector.load %arg3[%c0_3, %c0_4] : memref<32x1xf32, #tpu.memory_space<vmem>>, vector<32x1xf32>
    %4 = vector.broadcast %3 : vector<32x1xf32> to vector<32x128xf32>
    %5 = arith.addf %2, %4 : vector<32x128xf32>
    %cst_5 = arith.constant 0.000000e+00 : f32
    %6 = vector.broadcast %cst_5 : f32 to vector<32x128xf32>
    %7 = arith.maximumf %5, %6 : vector<32x128xf32>
    %c0_6 = arith.constant 0 : index
    %c0_7 = arith.constant 0 : index
    %8 = vector.load %arg4[%c0_6, %c0_7] : memref<32x32xf32, #tpu.memory_space<vmem>>, vector<32x32xf32>
    %cst_8 = arith.constant dense<0.000000e+00> : vector<32x128xf32>
    %9 = tpu.matmul %8, %7, %cst_8 {dimension_numbers = #tpu.dot_dimension_numbers<[1], [0], [0], [1], [0, 0, 1, 1], [], []>} : vector<32x32xf32>, vector<32x128xf32>, vector<32x128xf32> -> vector<32x128xf32>
    %c0_9 = arith.constant 0 : index
    %c0_10 = arith.constant 0 : index
    %10 = vector.load %arg5[%c0_9, %c0_10] : memref<32x1xf32, #tpu.memory_space<vmem>>, vector<32x1xf32>
    %11 = vector.broadcast %10 : vector<32x1xf32> to vector<32x128xf32>
    %12 = arith.addf %9, %11 : vector<32x128xf32>
    %cst_11 = arith.constant 0.000000e+00 : f32
    %13 = vector.broadcast %cst_11 : f32 to vector<32x128xf32>
    %14 = arith.maximumf %12, %13 : vector<32x128xf32>
    %c0_12 = arith.constant 0 : index
    %c0_13 = arith.constant 0 : index
    %15 = vector.load %arg6[%c0_12, %c0_13] : memref<8x32xf32, #tpu.memory_space<vmem>>, vector<8x32xf32>
    %cst_14 = arith.constant dense<0.000000e+00> : vector<8x128xf32>
    %16 = tpu.matmul %15, %14, %cst_14 {dimension_numbers = #tpu.dot_dimension_numbers<[1], [0], [0], [1], [0, 0, 1, 1], [], []>} : vector<8x32xf32>, vector<32x128xf32>, vector<8x128xf32> -> vector<8x128xf32>
    %c0_15 = arith.constant 0 : index
    %c0_16 = arith.constant 0 : index
    %17 = vector.load %arg7[%c0_15, %c0_16] : memref<8x1xf32, #tpu.memory_space<vmem>>, vector<8x1xf32>
    %18 = vector.broadcast %17 : vector<8x1xf32> to vector<8x128xf32>
    %19 = arith.addf %16, %18 : vector<8x128xf32>
    %c0_17 = arith.constant 0 : index
    %c0_18 = arith.constant 0 : index
    %20 = vector.load %arg8[%c0_17, %c0_18] : memref<8x128xf32, #tpu.memory_space<vmem>>, vector<8x128xf32>
    tpu.vector_store %arg8[%c0_17, %c0_18], %19 {strides = array<i32>} : memref<8x128xf32, #tpu.memory_space<vmem>>, vector<8x128xf32>,
    return
  }
  func.func @transform_0(%arg0: i32) -> (i32, i32) {
    %c0_i32 = arith.constant 0 : i32
    %c0_i32_0 = arith.constant 0 : i32
    return %c0_i32, %arg0 : i32, i32
  }
  func.func @transform_1(%arg0: i32) -> (i32, i32) {
    %c0_i32 = arith.constant 0 : i32
    %c0_i32_0 = arith.constant 0 : i32
    %c0_i32_1 = arith.constant 0 : i32
    return %c0_i32, %c0_i32_0 : i32, i32
  }
  func.func @transform_2(%arg0: i32) -> (i32, i32) {
    %c0_i32 = arith.constant 0 : i32
    %c0_i32_0 = arith.constant 0 : i32
    %c0_i32_1 = arith.constant 0 : i32
    return %c0_i32, %c0_i32_0 : i32, i32
  }
  func.func @transform_3(%arg0: i32) -> (i32, i32) {
    %c0_i32 = arith.constant 0 : i32
    %c0_i32_0 = arith.constant 0 : i32
    %c0_i32_1 = arith.constant 0 : i32
    return %c0_i32, %c0_i32_0 : i32, i32
  }
  func.func @transform_4(%arg0: i32) -> (i32, i32) {
    %c0_i32 = arith.constant 0 : i32
    %c0_i32_0 = arith.constant 0 : i32
    %c0_i32_1 = arith.constant 0 : i32
    return %c0_i32, %c0_i32_0 : i32, i32
  }
  func.func @transform_5(%arg0: i32) -> (i32, i32) {
    %c0_i32 = arith.constant 0 : i32
    %c0_i32_0 = arith.constant 0 : i32
    %c0_i32_1 = arith.constant 0 : i32
    return %c0_i32, %c0_i32_0 : i32, i32
  }
  func.func @transform_6(%arg0: i32) -> (i32, i32) {
    %c0_i32 = arith.constant 0 : i32
    %c0_i32_0 = arith.constant 0 : i32
    %c0_i32_1 = arith.constant 0 : i32
    return %c0_i32, %c0_i32_0 : i32, i32
  }
  func.func @transform_7(%arg0: i32) -> (i32, i32) {
    %c0_i32 = arith.constant 0 : i32
    %c0_i32_0 = arith.constant 0 : i32
    return %c0_i32, %arg0 : i32, i32
  }
}

</mosaic_0001>

<llo_original>
// kernel: mlp_forward.1
$region0: #{mlp_forward.1}
  #allocation0 [shape = 'u32[]', space=smem, size = 0x4, offset = 0x4, fixed_abs, tag = 'smem constant byte address 0x4 - core index']
  #allocation1 [shape = 'u32[72,128]{1,0:T(1,128)}', space=vmem, size = 0x9000, scoped, tag = 'internal scratch']
  %s0 = inlined_call_operand.vmem [shape: f32[5,128], index: 0, kind: input, shape index: {}]
  %s1 = inlined_call_operand.vmem [shape: f32[32,5], index: 1, kind: input, shape index: {}]
  %s2 = inlined_call_operand.vmem [shape: f32[32,1], index: 2, kind: input, shape index: {}]
  %s3 = inlined_call_operand.vmem [shape: f32[32,32], index: 3, kind: input, shape index: {}]
  %s4 = inlined_call_operand.vmem [shape: f32[32,1], index: 4, kind: input, shape index: {}]
  %s5 = inlined_call_operand.vmem [shape: f32[8,32], index: 5, kind: input, shape index: {}]
  %s6 = inlined_call_operand.vmem [shape: f32[8,1], index: 6, kind: input, shape index: {}]
  %s7 = inlined_call_operand.vmem [shape: f32[8,128], index: 7, kind: output, shape index: {}]
  %s8 = sld [smem:[#allocation0]]
  $region38: #{mlp_forward.1} parent=0
    _
  %s10 = ssub.s32 1, %s8
  %s11 = scalar_select 0, %s10, %s8
  // Predicated region
  $region2: #{mlp_forward.1} parent=0 // pred_check
    _
  $region3: #{mlp_forward.1} parent=0 // pred_check_branch
    %13 = sbr.rel (0) target = $region5
  $region4: #{mlp_forward.1} parent=0 // pred_region
    _
  $region5: #{mlp_forward.1} parent=0 // pred_fallthru
    _
  // Predicated region
  $region6: #{mlp_forward.1} parent=0 // pred_check
    _
  $region7: #{mlp_forward.1} parent=0 // pred_check_branch
    %15 = sbr.rel (0) target = $region9
  $region8: #{mlp_forward.1} parent=0 // pred_region
    _
  $region9: #{mlp_forward.1} parent=0 // pred_fallthru
    _
  // Predicated region
  $region10: #{mlp_forward.1} parent=0 // pred_check
    _
  $region11: #{mlp_forward.1} parent=0 // pred_check_branch
    %17 = sbr.rel (0) target = $region13
  $region12: #{mlp_forward.1} parent=0 // pred_region
    _
  $region13: #{mlp_forward.1} parent=0 // pred_fallthru
    _
  // Predicated region
  $region14: #{mlp_forward.1} parent=0 // pred_check
    _
  $region15: #{mlp_forward.1} parent=0 // pred_check_branch
    %19 = sbr.rel (0) target = $region17
  $region16: #{mlp_forward.1} parent=0 // pred_region
    _
  $region17: #{mlp_forward.1} parent=0 // pred_fallthru
    _
  // Predicated region
  $region18: #{mlp_forward.1} parent=0 // pred_check
    _
  $region19: #{mlp_forward.1} parent=0 // pred_check_branch
    %21 = sbr.rel (0) target = $region21
  $region20: #{mlp_forward.1} parent=0 // pred_region
    _
  $region21: #{mlp_forward.1} parent=0 // pred_fallthru
    _
  // Predicated region
  $region22: #{mlp_forward.1} parent=0 // pred_check
    _
  $region23: #{mlp_forward.1} parent=0 // pred_check_branch
    %23 = sbr.rel (0) target = $region25
  $region24: #{mlp_forward.1} parent=0 // pred_region
    _
  $region25: #{mlp_forward.1} parent=0 // pred_fallthru
    _
  // Predicated region
  $region26: #{mlp_forward.1} parent=0 // pred_check
    _
  $region27: #{mlp_forward.1} parent=0 // pred_check_branch
    %25 = sbr.rel (0) target = $region29
  $region28: #{mlp_forward.1} parent=0 // pred_region
    _
  $region29: #{mlp_forward.1} parent=0 // pred_fallthru
    _
  %v26 = vld [vmem:[%s1] sm:$0xff]
  %v27 = vld [vmem:[%s1 + $0x8] sm:$0xff]
  %v28 = vld [vmem:[%s1 + $0x10] sm:$0xff]
  %v29 = vld [vmem:[%s1 + $0x18] sm:$0xff]
  %v30 = vld [vmem:[%s0] sm:$0x1f]
  %v31 = vld [vmem:[%s2] sm:$0xff]
  %v32 = vld [vmem:[%s2 + $0x8] sm:$0xff]
  %v33 = vld [vmem:[%s2 + $0x10] sm:$0xff]
  %v34 = vld [vmem:[%s2 + $0x18] sm:$0xff]
  %36 = vset.pattern.permute.xlu0 0
  %37 = vperm.xlu0 %36, %v31
  %v38 = vpop.permute.xlu0 %37
  %41 = vset.pattern.permute.xlu0 0
  %42 = vperm.xlu0 %41, %v32
  %v43 = vpop.permute.xlu0 %42
  %46 = vset.pattern.permute.xlu0 0
  %47 = vperm.xlu0 %46, %v33
  %v48 = vpop.permute.xlu0 %47
  %51 = vset.pattern.permute.xlu0 0
  %52 = vperm.xlu0 %51, %v34
  %v53 = vpop.permute.xlu0 %52
  %vm55 = vcmask 39936
  %v57 = vsel %vm55, %v26, 0
  %v60 = vsel %vm55, %v27, 0
  %v63 = vsel %vm55, %v28, 0
  %v66 = vsel %vm55, %v29, 0
  %vm68 = vcmask 1044480
  %v70 = vsel %vm68, %v30, 0
  %72 = vmatpush.msra.mxu0 0.0
  %73 = vmatpush.msra.mxu0 0.0
  %74 = vmatpush.msra.mxu0 0.0
  %75 = vmatpush.msra.mxu0 0.0
  %76 = vmatpush.msra.mxu0 0.0
  %77 = vmatpush.msra.mxu0 0.0
  %78 = vmatpush.msra.mxu0 0.0
  %79 = vmatpush.msra.mxu0 0.0
  %80 = vmatpush.msra.mxu0 0.0
  %81 = vmatpush.msra.mxu0 0.0
  %82 = vmatpush.msra.mxu0 0.0
  %83 = vmatpush.msra.mxu0 0.0
  %84 = vmatpush.msra.mxu0 0.0
  %85 = vmatpush.msra.mxu0 0.0
  %86 = vmatpush.msra.mxu0 0.0
  %87 = vmatpush.msra.mxu0 %v70
  %88 = vmatmul.f32.gmra.mxu0 %v57
  %v89 = vpop.f32.mrf.mxu0
  %v90 = vadd.f32 %v38, %v89
  %91 = vmatmul.f32.gmra.mxu0 %v60
  %v92 = vpop.f32.mrf.mxu0
  %v93 = vadd.f32 %v43, %v92
  %94 = vmatmul.f32.gmra.mxu0 %v63
  %v95 = vpop.f32.mrf.mxu0
  %v96 = vadd.f32 %v48, %v95
  %97 = vmatmul.f32.gmra.mxu0 %v66
  %v98 = vpop.f32.mrf.mxu0
  %v99 = vadd.f32 %v53, %v98
  %100 = vdwg.mxu0
  %v101 = vmax.f32 %v90, 0.0
  %v102 = vmax.f32 %v93, 0.0
  %v103 = vmax.f32 %v96, 0.0
  %v104 = vmax.f32 %v99, 0.0
  %v105 = vld [vmem:[%s3] sm:$0xff]
  %v106 = vld [vmem:[%s3 + $0x8] sm:$0xff]
  %v107 = vld [vmem:[%s3 + $0x10] sm:$0xff]
  %v108 = vld [vmem:[%s3 + $0x18] sm:$0xff]
  %v109 = vld [vmem:[%s4] sm:$0xff]
  %v110 = vld [vmem:[%s4 + $0x8] sm:$0xff]
  %v111 = vld [vmem:[%s4 + $0x10] sm:$0xff]
  %v112 = vld [vmem:[%s4 + $0x18] sm:$0xff]
  %114 = vset.pattern.permute.xlu0 0
  %115 = vperm.xlu0 %114, %v109
  %v116 = vpop.permute.xlu0 %115
  %119 = vset.pattern.permute.xlu0 0
  %120 = vperm.xlu0 %119, %v110
  %v121 = vpop.permute.xlu0 %120
  %124 = vset.pattern.permute.xlu0 0
  %125 = vperm.xlu0 %124, %v111
  %v126 = vpop.permute.xlu0 %125
  %129 = vset.pattern.permute.xlu0 0
  %130 = vperm.xlu0 %129, %v112
  %v131 = vpop.permute.xlu0 %130
  %vm133 = vcmask 261120
  %v135 = vsel %vm133, %v105, 0
  %v138 = vsel %vm133, %v106, 0
  %v141 = vsel %vm133, %v107, 0
  %v144 = vsel %vm133, %v108, 0
  %146 = vmatpush.msra.mxu0 0.0
  %147 = vmatpush.msra.mxu0 0.0
  %148 = vmatpush.msra.mxu0 0.0
  %149 = vmatpush.msra.mxu0 0.0
  %150 = vmatpush.msra.mxu0 0.0
  %151 = vmatpush.msra.mxu0 0.0
  %152 = vmatpush.msra.mxu0 0.0
  %153 = vmatpush.msra.mxu0 0.0
  %154 = vmatpush.msra.mxu0 0.0
  %155 = vmatpush.msra.mxu0 0.0
  %156 = vmatpush.msra.mxu0 0.0
  %157 = vmatpush.msra.mxu0 0.0
  %158 = vmatpush.msra.mxu0 %v104
  %159 = vmatpush.msra.mxu0 %v103
  %160 = vmatpush.msra.mxu0 %v102
  %161 = vmatpush.msra.mxu0 %v101
  %162 = vmatmul.f32.gmra.mxu0 %v135
  %v163 = vpop.f32.mrf.mxu0
  %v164 = vadd.f32 %v116, %v163
  %165 = vmatmul.f32.gmra.mxu0 %v138
  %v166 = vpop.f32.mrf.mxu0
  %v167 = vadd.f32 %v121, %v166
  %168 = vmatmul.f32.gmra.mxu0 %v141
  %v169 = vpop.f32.mrf.mxu0
  %v170 = vadd.f32 %v126, %v169
  %171 = vmatmul.f32.gmra.mxu0 %v144
  %v172 = vpop.f32.mrf.mxu0
  %v173 = vadd.f32 %v131, %v172
  %174 = vdwg.mxu0
  %v175 = vmax.f32 %v164, 0.0
  %v176 = vmax.f32 %v167, 0.0
  %v177 = vmax.f32 %v170, 0.0
  %v178 = vmax.f32 %v173, 0.0
  %v179 = vld [vmem:[%s5] sm:$0xff]
  %v180 = vld [vmem:[%s6] sm:$0xff]
  %182 = vset.pattern.permute.xlu0 0
  %183 = vperm.xlu0 %182, %v180
  %v184 = vpop.permute.xlu0 %183
  %v187 = vsel %vm133, %v179, 0
  %189 = vmatpush.msra.mxu0 0.0
  %190 = vmatpush.msra.mxu0 0.0
  %191 = vmatpush.msra.mxu0 0.0
  %192 = vmatpush.msra.mxu0 0.0
  %193 = vmatpush.msra.mxu0 0.0
  %194 = vmatpush.msra.mxu0 0.0
  %195 = vmatpush.msra.mxu0 0.0
  %196 = vmatpush.msra.mxu0 0.0
  %197 = vmatpush.msra.mxu0 0.0
  %198 = vmatpush.msra.mxu0 0.0
  %199 = vmatpush.msra.mxu0 0.0
  %200 = vmatpush.msra.mxu0 0.0
  %201 = vmatpush.msra.mxu0 %v178
  %202 = vmatpush.msra.mxu0 %v177
  %203 = vmatpush.msra.mxu0 %v176
  %204 = vmatpush.msra.mxu0 %v175
  %205 = vmatmul.f32.gmra.mxu0 %v187
  %v206 = vpop.f32.mrf.mxu0
  %v207 = vadd.f32 %v184, %v206
  %208 = vdwg.mxu0
  %209 = vst [vmem:[%s7] sm:$0xff] %v207
  // Predicated region
  $region30: #{mlp_forward.1} parent=0 // pred_check
    _
  $region31: #{mlp_forward.1} parent=0 // pred_check_branch
    %211 = sbr.rel (0) target = $region33
  $region32: #{mlp_forward.1} parent=0 // pred_region
    _
  $region33: #{mlp_forward.1} parent=0 // pred_fallthru
    _
  // Predicated region
  $region34: #{mlp_forward.1} parent=0 // pred_check
    _
  $region35: #{mlp_forward.1} parent=0 // pred_check_branch
    %213 = sbr.rel (0) target = $region37
  $region36: #{mlp_forward.1} parent=0 // pred_region
    _
  $region37: #{mlp_forward.1} parent=0 // pred_fallthru
    _

</llo_original>
